<compile_context>
chip_gen: v6e
topology: v6e:2x2x1
jax: 0.10.0
libtpu: 0.0.40
codegen_flags: <defaults>
</compile_context>

<pallas_src>
import functools

import jax
import jax.numpy as jnp
from jax.experimental import pallas as pl
from jax.experimental.pallas import tpu as pltpu


def _round_up(x: int, m: int) -> int:
    return ((x + m - 1) // m) * m


def _vmem_capacity_bytes() -> int:
    """Physical VMEM per TensorCore; conservative fallback = v7x (64 MiB)."""
    try:
        cap = getattr(pltpu.get_tpu_info(), "vmem_capacity_bytes", None)
        if cap:
            return int(cap)
    except Exception:
        pass
    return 64 * 1024 * 1024


def bow_classifier_kernel(x_ref, w_ref, b_ref, o_ref, *,
                          num_labels, tk, weight_resident, compute_dtype):
    """One (batch-tile, vocab-tile) grid step of log_softmax(x @ W^T + b).

    x_ref: (tb, tk) activations (HBM dtype; cast to compute_dtype here).
    w_ref: (Vp, Lp) resident weight, or (tk, Lp) streamed tile.
    b_ref: (1, Lp) f32 bias.
    o_ref: (tb, Lp) f32 output; doubles as the accumulator (its block index is
           k-invariant, so it stays VMEM-resident across the vocab reduction).
    """
    k = pl.program_id(1)

    @pl.when(k == 0)
    def _init():
        o_ref[...] = jnp.zeros_like(o_ref)

    x = x_ref[...].astype(compute_dtype)
    if weight_resident:
        start = pl.multiple_of(k * tk, tk)       # aligned dynamic slice
        w = w_ref[pl.ds(start, tk), :]
    else:
        w = w_ref[...]

    # MXU matmul with f32 accumulation; label axis sits on lanes (lane-dense).
    o_ref[...] += jnp.dot(x, w, preferred_element_type=jnp.float32)

    @pl.when(k == pl.num_programs(1) - 1)
    def _epilogue():
        logits = o_ref[...] + b_ref[...]                       # (tb, Lp) f32
        # Mask padded label lanes so they cannot perturb max / logsumexp.
        lane = jax.lax.broadcasted_iota(jnp.int32, logits.shape, dimension=1)
        logits = jnp.where(lane < num_labels, logits, jnp.float32(-1e30))
        # Numerically stable log_softmax over the label axis (all f32 math).
        m = jnp.max(logits, axis=-1, keepdims=True)
        shifted = logits - m
        lse = jnp.log(jnp.sum(jnp.exp(shifted), axis=-1, keepdims=True))
        o_ref[...] = shifted - lse


def bow_classifier(bow_vec, weight, bias, *, compute_dtype=jnp.float32):
    """log_softmax(bow_vec @ weight.T + bias, axis=1).

    bow_vec: (B, V); weight: (L, V) (nn.Linear layout); bias: (L,).
    Returns (B, L) float32.
    """
    B, V = bow_vec.shape
    L = weight.shape[0]
    assert L >= 1, "num_labels must be >= 1"

    LANE = 128
    SUBLANE = 16   # bf16 vreg packing (16, 128); also a multiple of the f32 8

    # Lane-dense label axis; full-width MXU passes if L ever exceeds 128.
    Lp = _round_up(L, LANE) if L <= LANE else _round_up(L, 2 * LANE)

    # Batch tile: cap at 512, but guarantee >= 2 tiles so the "parallel" batch
    # axis can actually shard across v7x's two TensorCores.
    tb = min(512, _round_up(max((B + 1) // 2, 1), SUBLANE))
    Bp = _round_up(B, tb)

    # VMEM budget per TensorCore (~48 MiB on v7x, capped at 96 MiB on v5e/v6e).
    vmem_budget = min(_vmem_capacity_bytes() * 3 // 4, 96 * 1024 * 1024)

    x_itemsize = bow_vec.dtype.itemsize
    w_itemsize = jnp.dtype(compute_dtype).itemsize
    fixed_bytes = 2 * tb * Lp * 4 + 2 * Lp * 4   # resident output + bias

    def _fits(cand_tk, resident):
        vp = _round_up(V, cand_tk)
        x_bytes = 2 * tb * cand_tk * x_itemsize                 # 2-buffered x
        w_bytes = 2 * (vp if resident else cand_tk) * Lp * w_itemsize
        return x_bytes + w_bytes + fixed_bytes <= vmem_budget

    candidates = (8192, 4096, 2048, 1024, 512, 256, 128)
    tk = None
    weight_resident = True
    for cand in candidates:
        if _fits(cand, True):
            tk = cand
            break
    if tk is None:                      # weight too big to hold resident (v7x)
        weight_resident = False
        for cand in candidates:
            if _fits(cand, False):
                tk = cand
                break
        if tk is None:
            tk = 128
    tk = min(tk, _round_up(V, LANE))    # never wider than the padded vocab
    Vp = _round_up(V, tk)

    # Activations: no extra pad+cast pass unless the shape is misaligned.
    if (Bp, Vp) == (B, V):
        x_p = bow_vec
    else:
        x_p = jnp.zeros((Bp, Vp), bow_vec.dtype).at[:B, :V].set(bow_vec)

    # Weight (tiny, L << V): pre-transpose to (V, L) so the contraction needs
    # no in-kernel transpose and the label axis lands on lanes.
    w_t = weight.T.astype(compute_dtype)
    if (Vp, Lp) == (V, L):
        w_p = w_t
    else:
        w_p = jnp.zeros((Vp, Lp), compute_dtype).at[:V, :L].set(w_t)
    b_p = jnp.zeros((1, Lp), jnp.float32).at[0, :L].set(bias.astype(jnp.float32))

    kernel = functools.partial(
        bow_classifier_kernel,
        num_labels=L, tk=tk, weight_resident=weight_resident,
        compute_dtype=compute_dtype,
    )

    w_spec = (
        pl.BlockSpec((Vp, Lp), lambda i, k: (0, 0))       # resident: one DMA
        if weight_resident
        else pl.BlockSpec((tk, Lp), lambda i, k: (k, 0))  # streamed per k-step
    )

    cost = pl.CostEstimate(
        flops=2 * Bp * Vp * Lp,
        transcendentals=Bp * Lp,
        bytes_accessed=Bp * Vp * x_itemsize + Vp * Lp * w_itemsize + Bp * Lp * 4,
    )

    out_p = pl.pallas_call(
        kernel,
        out_shape=jax.ShapeDtypeStruct((Bp, Lp), jnp.float32),
        grid_spec=pltpu.PrefetchScalarGridSpec(
            num_scalar_prefetch=0,
            grid=(Bp // tb, Vp // tk),            # (batch tiles, vocab reduction)
            in_specs=[
                pl.BlockSpec((tb, tk), lambda i, k: (i, k)),   # activations
                w_spec,                                        # weight
                pl.BlockSpec((1, Lp), lambda i, k: (0, 0)),    # bias
            ],
            out_specs=pl.BlockSpec((tb, Lp), lambda i, k: (i, 0)),
        ),
        compiler_params=pltpu.CompilerParams(
            dimension_semantics=("parallel", "arbitrary"),
            vmem_limit_bytes=vmem_budget,
        ),
        cost_estimate=cost,
    )(x_p, w_p, b_p)

    # Strip batch / label padding.
    return out_p[:B, :L]


if __name__ == "__main__":
    # Small shapes consistent with the module: one bag-of-words vector/example.
    batch = 2
    vocab_size = 32
    num_labels = 4

    key = jax.random.PRNGKey(0)
    k_x, k_w, k_b = jax.random.split(key, 3)

    # Deterministic params (mimics nn.Linear's U(-1/sqrt(V), 1/sqrt(V)) init).
    bound = 1.0 / (vocab_size ** 0.5)
    weight = jax.random.uniform(
        k_w, (num_labels, vocab_size), jnp.float32, minval=-bound, maxval=bound
    )
    bias = jax.random.uniform(
        k_b, (num_labels,), jnp.float32, minval=-bound, maxval=bound
    )
    # Synthetic bag-of-words counts (non-negative floats).
    bow_vec = jax.random.uniform(k_x, (batch, vocab_size), jnp.float32) * 3.0

    out = bow_classifier(bow_vec, weight, bias)
    out = jax.block_until_ready(out)

    # Pure-JAX reference (tolerance leaves headroom for MXU matmul rounding).
    logits_ref = (
        jnp.dot(bow_vec, weight.T, precision=jax.lax.Precision.HIGHEST) + bias
    )
    ref = jax.nn.log_softmax(logits_ref, axis=1)

    assert out.shape == (batch, num_labels)
    assert bool(jnp.all(jnp.isfinite(out))), "non-finite output"
    assert jnp.allclose(out, ref, atol=2e-2, rtol=2e-2), "mismatch vs reference"

    print("KERNEL_OK")
</pallas_src>

<mosaic_0001>
module attributes {stable_mosaic.version = 11 : i64} {
  func.func @bow_classifier_kernel(%arg0: i32, %arg1: i32, %arg2: memref<16x128xf32, #tpu.memory_space<vmem>>, %arg3: memref<128x128xf32, #tpu.memory_space<vmem>>, %arg4: memref<1x128xf32, #tpu.memory_space<vmem>>, %arg5: memref<16x128xf32, #tpu.memory_space<vmem>>) attributes {dimension_semantics = [#tpu.dimension_semantics<parallel>, #tpu.dimension_semantics<arbitrary>], iteration_bounds = array<i64: 1, 1>, scalar_prefetch = 0 : i64, scratch_operands = 0 : i64, tpu.core_type = #tpu.core_type<tc>, window_params = [{transform_indices = @transform_0, window_bounds = array<i64: 16, 128>}, {pipeline_mode = #tpu.pipeline_mode<synchronous>, transform_indices = @transform_1, window_bounds = array<i64: 128, 128>}, {pipeline_mode = #tpu.pipeline_mode<synchronous>, transform_indices = @transform_2, window_bounds = array<i64: 1, 128>}, {transform_indices = @transform_3, window_bounds = array<i64: 16, 128>}]} {
    %c0_i32 = arith.constant 0 : i32
    %0 = arith.cmpi eq, %arg1, %c0_i32 : i32
    %1 = arith.extui %0 : i1 to i32
    %c0_i32_0 = arith.constant 0 : i32
    %2 = arith.cmpi ne, %1, %c0_i32_0 : i32
    scf.if %2 {
      %cst_9 = arith.constant 0.000000e+00 : f32
      %15 = vector.broadcast %cst_9 : f32 to vector<16x128xf32>
      %c0_10 = arith.constant 0 : index
      %c0_11 = arith.constant 0 : index
      %16 = vector.load %arg5[%c0_10, %c0_11] : memref<16x128xf32, #tpu.memory_space<vmem>>, vector<16x128xf32>
      tpu.vector_store %arg5[%c0_10, %c0_11], %15 {strides = array<i32>} : memref<16x128xf32, #tpu.memory_space<vmem>>, vector<16x128xf32>,
    } else {
    }
    %c0 = arith.constant 0 : index
    %c0_1 = arith.constant 0 : index
    %3 = vector.load %arg2[%c0, %c0_1] : memref<16x128xf32, #tpu.memory_space<vmem>>, vector<16x128xf32>
    %c128_i32 = arith.constant 128 : i32
    %4 = arith.muli %arg1, %c128_i32 : i32
    %5 = tpu.assume_multiple %4, 128 : i32
    %6 = arith.index_cast %5 : i32 to index
    %c0_2 = arith.constant 0 : index
    %7 = vector.load %arg3[%6, %c0_2] : memref<128x128xf32, #tpu.memory_space<vmem>>, vector<128x128xf32>
    %c0_3 = arith.constant 0 : index
    %c0_4 = arith.constant 0 : index
    %8 = vector.load %arg5[%c0_3, %c0_4] : memref<16x128xf32, #tpu.memory_space<vmem>>, vector<16x128xf32>
    %cst = arith.constant dense<0.000000e+00> : vector<16x128xf32>
    %9 = tpu.matmul %3, %7, %cst {dimension_numbers = #tpu.dot_dimension_numbers<[1], [0], [0], [1], [0, 0, 1, 1], [], []>} : vector<16x128xf32>, vector<128x128xf32>, vector<16x128xf32> -> vector<16x128xf32>
    %10 = arith.addf %8, %9 : vector<16x128xf32>
    %c0_5 = arith.constant 0 : index
    %c0_6 = arith.constant 0 : index
    %11 = vector.load %arg5[%c0_5, %c0_6] : memref<16x128xf32, #tpu.memory_space<vmem>>, vector<16x128xf32>
    tpu.vector_store %arg5[%c0_5, %c0_6], %10 {strides = array<i32>} : memref<16x128xf32, #tpu.memory_space<vmem>>, vector<16x128xf32>,
    %c0_i32_7 = arith.constant 0 : i32
    %12 = arith.cmpi eq, %arg1, %c0_i32_7 : i32
    %13 = arith.extui %12 : i1 to i32
    %c0_i32_8 = arith.constant 0 : i32
    %14 = arith.cmpi ne, %13, %c0_i32_8 : i32
    scf.if %14 {
      %c0_9 = arith.constant 0 : index
      %c0_10 = arith.constant 0 : index
      %15 = vector.load %arg5[%c0_9, %c0_10] : memref<16x128xf32, #tpu.memory_space<vmem>>, vector<16x128xf32>
      %c0_11 = arith.constant 0 : index
      %c0_12 = arith.constant 0 : index
      %16 = vector.load %arg4[%c0_11, %c0_12] : memref<1x128xf32, #tpu.memory_space<vmem>>, vector<1x128xf32>
      %17 = vector.broadcast %16 : vector<1x128xf32> to vector<16x128xf32>
      %18 = arith.addf %15, %17 : vector<16x128xf32>
      %19 = tpu.iota {dimensions = array<i32: 1>} : vector<16x128xi32>
      %c4_i32 = arith.constant 4 : i32
      %20 = vector.broadcast %c4_i32 : i32 to vector<16x128xi32>
      %21 = arith.cmpi slt, %19, %20 : vector<16x128xi32>
      %cst_13 = arith.constant -1.000000e+30 : f32
      %22 = vector.broadcast %cst_13 : f32 to vector<16x128xf32>
      %23 = arith.select %21, %18, %22 : vector<16x128xi1>, vector<16x128xf32>
      %cst_14 = arith.constant dense<0xFF800000> : vector<16xf32>
      %24 = vector.multi_reduction <maximumf>, %23, %cst_14 [1] : vector<16x128xf32> to vector<16xf32>
      %25 = vector.shape_cast %24 : vector<16xf32> to vector<16x1xf32>
      %26 = vector.broadcast %25 : vector<16x1xf32> to vector<16x128xf32>
      %27 = arith.subf %23, %26 : vector<16x128xf32>
      %28 = math.exp %27 : vector<16x128xf32>
      %cst_15 = arith.constant dense<0.000000e+00> : vector<16xf32>
      %29 = vector.multi_reduction <add>, %28, %cst_15 [1] : vector<16x128xf32> to vector<16xf32>
      %30 = vector.shape_cast %29 : vector<16xf32> to vector<16x1xf32>
      %31 = math.log %30 : vector<16x1xf32>
      %32 = vector.broadcast %31 : vector<16x1xf32> to vector<16x128xf32>
      %33 = arith.subf %27, %32 : vector<16x128xf32>
      %c0_16 = arith.constant 0 : index
      %c0_17 = arith.constant 0 : index
      %34 = vector.load %arg5[%c0_16, %c0_17] : memref<16x128xf32, #tpu.memory_space<vmem>>, vector<16x128xf32>
      tpu.vector_store %arg5[%c0_16, %c0_17], %33 {strides = array<i32>} : memref<16x128xf32, #tpu.memory_space<vmem>>, vector<16x128xf32>,
    } else {
    }
    return
  }
  func.func @transform_0(%arg0: i32, %arg1: i32) -> (i32, i32) {
    %c0_i32 = arith.constant 0 : i32
    return %arg0, %arg1 : i32, i32
  }
  func.func @transform_1(%arg0: i32, %arg1: i32) -> (i32, i32) {
    %c0_i32 = arith.constant 0 : i32
    %c0_i32_0 = arith.constant 0 : i32
    %c0_i32_1 = arith.constant 0 : i32
    return %c0_i32, %c0_i32_0 : i32, i32
  }
  func.func @transform_2(%arg0: i32, %arg1: i32) -> (i32, i32) {
    %c0_i32 = arith.constant 0 : i32
    %c0_i32_0 = arith.constant 0 : i32
    %c0_i32_1 = arith.constant 0 : i32
    return %c0_i32, %c0_i32_0 : i32, i32
  }
  func.func @transform_3(%arg0: i32, %arg1: i32) -> (i32, i32) {
    %c0_i32 = arith.constant 0 : i32
    %c0_i32_0 = arith.constant 0 : i32
    return %arg0, %c0_i32 : i32, i32
  }
}

</mosaic_0001>

<llo_original>
// kernel: tpu_custom_call.1
$region0: #{tpu_custom_call.1}
  #allocation0 [shape = 'u32[]', space=smem, size = 0x4, offset = 0x4, fixed_abs, tag = 'smem constant byte address 0x4 - core index']
  #allocation1 [shape = 'u32[144,128]{1,0:T(1,128)}', space=vmem, size = 0x12000, scoped, tag = 'internal scratch']
  %s0 = inlined_call_operand.hbm [shape: f32[16,128], index: 0, kind: input, shape index: {}]
  %s1 = inlined_call_operand.hbm [shape: f32[128,128], index: 1, kind: input, shape index: {}]
  %s2 = inlined_call_operand.vmem [shape: f32[1,128], index: 2, kind: input, shape index: {}]
  %s3 = inlined_call_operand.hbm [shape: f32[16,128], index: 3, kind: output, shape index: {}]
  %s4 = sld [smem:[#allocation0]]
  $region38: #{tpu_custom_call.1} parent=0
    _
  %s6 = ssub.s32 1, %s4
  %s7 = scalar_select 0, %s6, %s4
  $region1: #{tpu_custom_call.1} parent=0
    #allocation2 [shape = 'u8[8192]{0}', space=vmem, size = 0x2000, scoped, tag = 'input window, operand 0, single buffered']
    #allocation3 [shape = 's32[1]{0}', space=sflag, size = 0x4, scoped, tag = 'scoped memory for tpu_custom_call.1']
    #allocation4 [shape = 's32[1]{0}', space=sflag, size = 0x4, scoped, tag = 'scoped memory for tpu_custom_call.1']
    #allocation5 [shape = 'u8[65536]{0}', space=vmem, size = 0x10000, scoped, tag = 'input window, operand 1, single buffered']
    #allocation6 [shape = 's32[1]{0}', space=sflag, size = 0x4, scoped, tag = 'scoped memory for tpu_custom_call.1']
    #allocation7 [shape = 'u8[8192]{0}', space=vmem, size = 0x2000, scoped, tag = 'output window, operand 0, single buffered']
    %8 = vsyncpa [#allocation3], 0
    %9 = vsyncpa [#allocation6], 0
    %10 = vsyncpa [#allocation4], 0
    // Predicated region
    $region2: #{tpu_custom_call.1} parent=1 // pred_check
      _
    $region3: #{tpu_custom_call.1} parent=1 // pred_check_branch
      %12 = sbr.rel (0) target = $region5
    $region4: #{tpu_custom_call.1} parent=1 // pred_region
      %s14 = ssub.s32 256, 256
      %15 = vsyncadd [#allocation3], %s14
      %s16 = sshll.u32 [#allocation2], 4
      %s17 = int_to_ptr.vmem [resolvable:$true] %s16
      %22 = dma.hbm_to_vmem [thread:$0]  %s0, 256, %s17, [#allocation3], 128, 128, 8
    $region5: #{tpu_custom_call.1} parent=1 // pred_fallthru
      _
    // Predicated region
    $region6: #{tpu_custom_call.1} parent=1 // pred_check
      _
    $region7: #{tpu_custom_call.1} parent=1 // pred_check_branch
      %24 = sbr.rel (0) target = $region9
    $region8: #{tpu_custom_call.1} parent=1 // pred_region
      %s26 = ssub.s32 2048, 2048
      %27 = vsyncadd [#allocation6], %s26
      %s28 = sshll.u32 [#allocation5], 4
      %s29 = int_to_ptr.vmem [resolvable:$true] %s28
      %34 = dma.hbm_to_vmem [thread:$0]  %s1, 2048, %s29, [#allocation6], 128, 128, 8
    $region9: #{tpu_custom_call.1} parent=1 // pred_fallthru
      _
    // Predicated region
    $region10: #{tpu_custom_call.1} parent=1 // pred_check
      _
    $region11: #{tpu_custom_call.1} parent=1 // pred_check_branch
      %36 = sbr.rel (0) target = $region13
    $region12: #{tpu_custom_call.1} parent=1 // pred_region
      _
    $region13: #{tpu_custom_call.1} parent=1 // pred_fallthru
      _
    // Predicated region
    $region14: #{tpu_custom_call.1} parent=1 // pred_check
      _
    $region15: #{tpu_custom_call.1} parent=1 // pred_check_branch
      %38 = sbr.rel (0) target = $region17
    $region16: #{tpu_custom_call.1} parent=1 // pred_region
      %39 = dma.done [#allocation3], 256
    $region17: #{tpu_custom_call.1} parent=1 // pred_fallthru
      _
    // Predicated region
    $region18: #{tpu_custom_call.1} parent=1 // pred_check
      _
    $region19: #{tpu_custom_call.1} parent=1 // pred_check_branch
      %41 = sbr.rel (0) target = $region21
    $region20: #{tpu_custom_call.1} parent=1 // pred_region
      %42 = dma.done [#allocation6], 2048
    $region21: #{tpu_custom_call.1} parent=1 // pred_fallthru
      _
    %p43 = scmp.eq.s32.totalorder 0, 0
    // Predicated region
    $region22: #{tpu_custom_call.1} parent=1 // pred_check
      %p44 = pneg %p43
    $region23: #{tpu_custom_call.1} parent=1 // pred_check_branch
      %46 = sbr.rel (%p44) target = $region25
    $region24: #{tpu_custom_call.1} parent=1 // pred_region
      %47 = vst [vmem:[#allocation7] sm:$0xff] 0.0
      %48 = vst [vmem:[#allocation7 + $0x8] sm:$0xff] 0.0
    $region25: #{tpu_custom_call.1} parent=1 // pred_fallthru
      _
    %v49 = vld [vmem:[#allocation2] sm:$0xff]
    %v50 = vld [vmem:[#allocation2 + $0x8] sm:$0xff]
    %s51 = smul.u32 0, 128
    %s52 = scalar_lea.vmem [#allocation5], %s51
    %v53 = vld [vmem:[%s52] sm:$0xff]
    %v54 = vld [vmem:[%s52 + $0x8] sm:$0xff]
    %v55 = vld [vmem:[%s52 + $0x10] sm:$0xff]
    %v56 = vld [vmem:[%s52 + $0x18] sm:$0xff]
    %v57 = vld [vmem:[%s52 + $0x20] sm:$0xff]
    %v58 = vld [vmem:[%s52 + $0x28] sm:$0xff]
    %v59 = vld [vmem:[%s52 + $0x30] sm:$0xff]
    %v60 = vld [vmem:[%s52 + $0x38] sm:$0xff]
    %v61 = vld [vmem:[%s52 + $0x40] sm:$0xff]
    %v62 = vld [vmem:[%s52 + $0x48] sm:$0xff]
    %v63 = vld [vmem:[%s52 + $0x50] sm:$0xff]
    %v64 = vld [vmem:[%s52 + $0x58] sm:$0xff]
    %v65 = vld [vmem:[%s52 + $0x60] sm:$0xff]
    %v66 = vld [vmem:[%s52 + $0x68] sm:$0xff]
    %v67 = vld [vmem:[%s52 + $0x70] sm:$0xff]
    %v68 = vld [vmem:[%s52 + $0x78] sm:$0xff]
    %v69 = vld [vmem:[#allocation7] sm:$0xff]
    %v70 = vld [vmem:[#allocation7 + $0x8] sm:$0xff]
    %71 = vmatprep.subr.mxu0 0.0
    %72 = vmatpush1.msra.mxu0 %v68
    %73 = vmatprep.subr.mxu0 0.0
    %74 = vmatpush1.msra.mxu0 %v67
    %75 = vmatprep.subr.mxu0 0.0
    %76 = vmatpush1.msra.mxu0 %v66
    %77 = vmatprep.subr.mxu0 0.0
    %78 = vmatpush1.msra.mxu0 %v65
    %79 = vmatprep.subr.mxu0 0.0
    %80 = vmatpush1.msra.mxu0 %v64
    %81 = vmatprep.subr.mxu0 0.0
    %82 = vmatpush1.msra.mxu0 %v63
    %83 = vmatprep.subr.mxu0 0.0
    %84 = vmatpush1.msra.mxu0 %v62
    %85 = vmatprep.subr.mxu0 0.0
    %86 = vmatpush1.msra.mxu0 %v61
    %87 = vmatprep.subr.mxu0 0.0
    %88 = vmatpush1.msra.mxu0 %v60
    %89 = vmatprep.subr.mxu0 0.0
    %90 = vmatpush1.msra.mxu0 %v59
    %91 = vmatprep.subr.mxu0 0.0
    %92 = vmatpush1.msra.mxu0 %v58
    %93 = vmatprep.subr.mxu0 0.0
    %94 = vmatpush1.msra.mxu0 %v57
    %95 = vmatprep.subr.mxu0 0.0
    %96 = vmatpush1.msra.mxu0 %v56
    %97 = vmatprep.subr.mxu0 0.0
    %98 = vmatpush1.msra.mxu0 %v55
    %99 = vmatprep.subr.mxu0 0.0
    %100 = vmatpush1.msra.mxu0 %v54
    %101 = vmatprep.subr.mxu0 0.0
    %102 = vmatpush1.msra.mxu0 %v53
    %103 = vmatprep.subr.mxu0 0.0
    %104 = vmatpush2.msra.mxu0 0.0
    %105 = vmatprep.subr.mxu0 0.0
    %106 = vmatpush2.msra.mxu0 0.0
    %107 = vmatprep.subr.mxu0 0.0
    %108 = vmatpush2.msra.mxu0 0.0
    %109 = vmatprep.subr.mxu0 0.0
    %110 = vmatpush2.msra.mxu0 0.0
    %111 = vmatprep.subr.mxu0 0.0
    %112 = vmatpush2.msra.mxu0 0.0
    %113 = vmatprep.subr.mxu0 0.0
    %114 = vmatpush2.msra.mxu0 0.0
    %115 = vmatprep.subr.mxu0 0.0
    %116 = vmatpush2.msra.mxu0 0.0
    %117 = vmatprep.subr.mxu0 0.0
    %118 = vmatpush2.msra.mxu0 0.0
    %119 = vmatprep.subr.mxu0 0.0
    %120 = vmatpush2.msra.mxu0 0.0
    %121 = vmatprep.subr.mxu0 0.0
    %122 = vmatpush2.msra.mxu0 0.0
    %123 = vmatprep.subr.mxu0 0.0
    %124 = vmatpush2.msra.mxu0 0.0
    %125 = vmatprep.subr.mxu0 0.0
    %126 = vmatpush2.msra.mxu0 0.0
    %127 = vmatprep.subr.mxu0 0.0
    %128 = vmatpush2.msra.mxu0 0.0
    %129 = vmatprep.subr.mxu0 0.0
    %130 = vmatpush2.msra.mxu0 0.0
    %131 = vmatprep.subr.mxu0 0.0
    %132 = vmatpush2.msra.mxu0 0.0
    %133 = vmatprep.subr.mxu0 0.0
    %134 = vmatpush2.msra.mxu0 0.0
    %135 = vmatprep.mubr.f32.mxu0 0.0
    %136 = vmatmul.mubr.f32.gmra.mxu0 %v49
    %v137 = vpop.f32.mrf.mxu0
    %v138 = vadd.f32 0.0, %v137
    %v139 = vpop.f32.mrf.mxu0
    %140 = vmatprep.mubr.f32.mxu0 0.0
    %141 = vmatmul.mubr.f32.gmra.mxu0 %v50
    %v142 = vpop.f32.mrf.mxu0
    %v143 = vadd.f32 0.0, %v142
    %v144 = vpop.f32.mrf.mxu0
    %145 = vdwg.mxu0
    %v146 = vadd.f32 %v69, %v138
    %v147 = vadd.f32 %v70, %v143
    %148 = vst [vmem:[#allocation7] sm:$0xff] %v146
    %149 = vst [vmem:[#allocation7 + $0x8] sm:$0xff] %v147
    // Predicated region
    $region26: #{tpu_custom_call.1} parent=1 // pred_check
      %p150 = pneg %p43
    $region27: #{tpu_custom_call.1} parent=1 // pred_check_branch
      %152 = sbr.rel (%p150) target = $region29
    $region28: #{tpu_custom_call.1} parent=1 // pred_region
      %v153 = vld [vmem:[#allocation7] sm:$0xff]
      %v154 = vld [vmem:[#allocation7 + $0x8] sm:$0xff]
      %v155 = vld [vmem:[%s2] sm:$0x1]
      %v157 = vlaneseq
      %v158 = vshrl.u32 %v157, 7
      %v159 = vsub.s32 0, %v158
      %v160 = vrot.slane %v155, %v159
      %v162 = vadd.f32 %v153, %v160
      %v163 = vadd.f32 %v154, %v160
      %v164 = vlaneseq
      %v165 = vand.u32 %v164, 127
      %vm166 = vcmp.lt.s32.totalorder %v165, 4
      %v167 = vsel %vm166, %v162, -1e+30
      %v168 = vsel %vm166, %v163, -1e+30
      %169 = vmax.xlane.f32.xlu0 %v167
      %v170 = vpop.xlane.xlu0 %169
      %171 = vmax.xlane.f32.xlu0 %v168
      %v172 = vpop.xlane.xlu0 %171
      %v173 = vsub.f32 %v167, %v170
      %v174 = vsub.f32 %v168, %v172
      %v175 = vmul.f32 %v173, 1.442695
      %v176 = vpow.pop %v175
      %v177 = vmul.f32 %v174, 1.442695
      %v178 = vpow.pop %v177
      %179 = vadd.xlane.f32.xlu0 %v176
      %v180 = vpop.xlane.xlu0 %179
      %181 = vadd.xlane.f32.xlu0 %v178
      %v182 = vpop.xlane.xlu0 %181
      %v183 = vlog2.pop %v180
      %v184 = vmul.f32 %v183, 0.6931472
      %v185 = vlog2.pop %v182
      %v186 = vmul.f32 %v185, 0.6931472
      %v187 = vsub.f32 %v173, %v184
      %v188 = vsub.f32 %v174, %v186
      %189 = vst [vmem:[#allocation7] sm:$0xff] %v187
      %190 = vst [vmem:[#allocation7 + $0x8] sm:$0xff] %v188
    $region29: #{tpu_custom_call.1} parent=1 // pred_fallthru
      _
    // Predicated region
    $region30: #{tpu_custom_call.1} parent=1 // pred_check
      _
    $region31: #{tpu_custom_call.1} parent=1 // pred_check_branch
      %192 = sbr.rel (0) target = $region33
    $region32: #{tpu_custom_call.1} parent=1 // pred_region
      %s194 = ssub.s32 256, 256
      %195 = vsyncadd [#allocation4], %s194
      %s196 = sshll.u32 [#allocation7], 4
      %s197 = int_to_ptr.vmem [resolvable:$true] %s196
      %202 = dma.vmem_to_hbm [thread:$0]  %s197, 256, %s3, [#allocation4], 128, 128, 8
    $region33: #{tpu_custom_call.1} parent=1 // pred_fallthru
      _
    // Predicated region
    $region34: #{tpu_custom_call.1} parent=1 // pred_check
      _
    $region35: #{tpu_custom_call.1} parent=1 // pred_check_branch
      %204 = sbr.rel (0) target = $region37
    $region36: #{tpu_custom_call.1} parent=1 // pred_region
      %205 = dma.done [#allocation4], 256
    $region37: #{tpu_custom_call.1} parent=1 // pred_fallthru
      _
    %206 = vsyncpa [#allocation3], 1
    %207 = vsyncpa [#allocation6], 1
    %208 = vsyncpa [#allocation4], 1

</llo_original>
